<compile_context>
chip_gen: v6e
topology: v6e:2x2x1
jax: 0.10.0
libtpu: 0.0.40
codegen_flags: <defaults>
</compile_context>

<pallas_src>
import math
from functools import partial

import jax
import jax.numpy as jnp
from jax.experimental import pallas as pl
from jax.experimental.pallas import tpu as pltpu


_DEFAULT_BLOCK_B = 256  # batch tile; comfortably fits v7x's 64 MiB VMEM


def _round_up(x, m):
    return ((x + m - 1) // m) * m


# ----------------------------------------------------------------------------
# Kernel
# ----------------------------------------------------------------------------
def _critic_kernel(state_ref, action_ref, w1_ref, b1_ref, w2a_ref, w2b_ref,
                   b2_ref, w3_ref, b3_ref, out_ref):
    wdt = w1_ref.dtype

    # fc1 + ReLU (MXU, f32 accumulate; bias / relu on VPU in f32).
    h1 = jnp.dot(state_ref[...].astype(wdt), w1_ref[...],
                 preferred_element_type=jnp.float32)
    h1 = jnp.maximum(h1 + b1_ref[...], 0.0)

    # fc2 with the concat folded away: two MXU passes sharing the f32
    # accumulator semantics (h1 block is the dominant K=512 matmul, the
    # action block is a tiny K=act matmul).
    h2 = jnp.dot(h1.astype(wdt), w2a_ref[...],
                 preferred_element_type=jnp.float32)
    h2 = h2 + jnp.dot(action_ref[...].astype(wdt), w2b_ref[...],
                      preferred_element_type=jnp.float32)
    h2 = jnp.maximum(h2 + b2_ref[...], 0.0)

    # fc3 scalar head: VPU multiply + XLU lane reduction (no N=1 MXU pass),
    # b3 read as a scalar from SMEM.
    q = jnp.sum(h2 * w3_ref[...], axis=-1, keepdims=True) + b3_ref[0, 0]
    out_ref[...] = q.astype(out_ref.dtype)


# ----------------------------------------------------------------------------
# One-time weight packing (hoisted out of the per-call forward)
# ----------------------------------------------------------------------------
def prepare_critic_params(params, compute_dtype=jnp.float32):
    """Pack/pad the PyTorch-layout params for the kernel. Call once.

    Returns (w1_p, b1_p, w2a_p, w2b_p, b2_p, w3_p, b3_p):
      w1_p  : (obs, 512)     fc1 weight, transposed, zero-padded cols
      b1_p  : (1, 512)       f32
      w2a_p : (512, 384)     fc2 weight block that multiplies h1 (rows 400..512 zero)
      w2b_p : (act, 384)     fc2 weight block that multiplies the action
      b2_p  : (1, 384)       f32
      w3_p  : (1, 384)       f32 row vector for the VPU head
      b3_p  : (1, 1)         f32 scalar (placed in SMEM)
    """
    w1, b1, w2, b2, w3, b3 = params
    fc1, obs = w1.shape
    fc2 = w2.shape[0]
    act = w2.shape[1] - fc1
    fc1_p = _round_up(fc1, 128)   # 400 -> 512
    fc2_p = _round_up(fc2, 128)   # 300 -> 384

    w1_p = jnp.zeros((obs, fc1_p), compute_dtype)
    w1_p = w1_p.at[:, :fc1].set(w1.T.astype(compute_dtype))
    b1_p = jnp.zeros((1, fc1_p), jnp.float32)
    b1_p = b1_p.at[:, :fc1].set(b1.reshape(1, fc1).astype(jnp.float32))

    w2_t = w2.T.astype(compute_dtype)                    # (fc1 + act, fc2)
    w2a_p = jnp.zeros((fc1_p, fc2_p), compute_dtype)
    w2a_p = w2a_p.at[:fc1, :fc2].set(w2_t[:fc1])         # rows that see h1
    w2b_p = jnp.zeros((act, fc2_p), compute_dtype)
    w2b_p = w2b_p.at[:, :fc2].set(w2_t[fc1:])            # rows that see action
    b2_p = jnp.zeros((1, fc2_p), jnp.float32)
    b2_p = b2_p.at[:, :fc2].set(b2.reshape(1, fc2).astype(jnp.float32))

    w3_p = jnp.zeros((1, fc2_p), jnp.float32)
    w3_p = w3_p.at[:, :fc2].set(w3.reshape(1, fc2).astype(jnp.float32))
    b3_p = b3.reshape(1, 1).astype(jnp.float32)

    return (w1_p, b1_p, w2a_p, w2b_p, b2_p, w3_p, b3_p)


# ----------------------------------------------------------------------------
# Forward
# ----------------------------------------------------------------------------
def _critic_forward_impl(state, action, prepared, *, block_b=_DEFAULT_BLOCK_B):
    w1_p, b1_p, w2a_p, w2b_p, b2_p, w3_p, b3_p = prepared
    B, obs = state.shape
    act = action.shape[1]
    fc1_p = w1_p.shape[1]
    fc2_p = w2a_p.shape[1]

    state = state.astype(jnp.float32)
    action = action.astype(jnp.float32)

    # Single block for small batches (grid overhead would dominate),
    # tiled + double-buffered for large batches.
    tb = block_b if B > block_b else _round_up(B, 8)
    b_pad = _round_up(B, tb)
    if b_pad != B:
        state = jnp.pad(state, ((0, b_pad - B), (0, 0)))
        action = jnp.pad(action, ((0, b_pad - B), (0, 0)))

    const2 = lambda i: (0, 0)  # weights stay VMEM-resident across batch tiles

    out = pl.pallas_call(
        _critic_kernel,
        out_shape=jax.ShapeDtypeStruct((b_pad, 1), jnp.float32),
        grid=(b_pad // tb,),
        in_specs=[
            pl.BlockSpec((tb, obs), lambda i: (i, 0)),           # state tile
            pl.BlockSpec((tb, act), lambda i: (i, 0)),           # action tile
            pl.BlockSpec((obs, fc1_p), const2),                  # W1
            pl.BlockSpec((1, fc1_p), const2),                    # b1
            pl.BlockSpec((fc1_p, fc2_p), const2),                # W2 (h1 block)
            pl.BlockSpec((act, fc2_p), const2),                  # W2 (action block)
            pl.BlockSpec((1, fc2_p), const2),                    # b2
            pl.BlockSpec((1, fc2_p), const2),                    # w3 row
            pl.BlockSpec(memory_space=pltpu.MemorySpace.SMEM),   # b3 scalar
        ],
        out_specs=pl.BlockSpec((tb, 1), lambda i: (i, 0)),
        compiler_params=pltpu.CompilerParams(
            dimension_semantics=("parallel",)),
    )(state, action, w1_p, b1_p, w2a_p, w2b_p, b2_p, w3_p, b3_p)

    return out[:B]


critic_forward = jax.jit(partial(_critic_forward_impl))


# ----------------------------------------------------------------------------
# Init (mirrors the PyTorch module's reset_parameters) and pure-JAX reference
# ----------------------------------------------------------------------------
def init_critic_params(key, observation_size, action_size,
                       fc1_units=400, fc2_units=300):
    """hidden_layer_init uses weight.size(0) == out_features:
      fc1 weight ~ U(-1/sqrt(fc1_units), 1/sqrt(fc1_units))
      fc2 weight ~ U(-1/sqrt(fc2_units), 1/sqrt(fc2_units))
      fc3 weight ~ U(-0.003, 0.003)
    Biases keep PyTorch's default Linear init: U(-1/sqrt(fan_in), 1/sqrt(fan_in)).
    """
    ks = jax.random.split(key, 6)
    l1 = 1.0 / math.sqrt(fc1_units)
    l2 = 1.0 / math.sqrt(fc2_units)
    l3 = 0.003
    in2 = fc1_units + action_size

    w1 = jax.random.uniform(ks[0], (fc1_units, observation_size), jnp.float32, -l1, l1)
    b1 = jax.random.uniform(ks[1], (fc1_units,), jnp.float32,
                            -1.0 / math.sqrt(observation_size),
                            1.0 / math.sqrt(observation_size))
    w2 = jax.random.uniform(ks[2], (fc2_units, in2), jnp.float32, -l2, l2)
    b2 = jax.random.uniform(ks[3], (fc2_units,), jnp.float32,
                            -1.0 / math.sqrt(in2), 1.0 / math.sqrt(in2))
    w3 = jax.random.uniform(ks[4], (1, fc2_units), jnp.float32, -l3, l3)
    b3 = jax.random.uniform(ks[5], (1,), jnp.float32,
                            -1.0 / math.sqrt(fc2_units), 1.0 / math.sqrt(fc2_units))
    return (w1, b1, w2, b2, w3, b3)


def critic_forward_ref(state, action, params):
    """Pure-JAX reference matching the PyTorch forward exactly."""
    (w1, b1, w2, b2, w3, b3) = params
    h1 = jax.nn.relu(state @ w1.T + b1)
    z = jnp.concatenate([h1, action], axis=1)
    h2 = jax.nn.relu(z @ w2.T + b2)
    return h2 @ w3.T + b3


if __name__ == "__main__":
    key = jax.random.PRNGKey(0)
    k_params, k_state, k_action = jax.random.split(key, 3)

    batch = 8
    observation_size = 32
    action_size = 8

    params = init_critic_params(k_params, observation_size, action_size)
    prepared = prepare_critic_params(params)          # one-time packing
    state = jax.random.normal(k_state, (batch, observation_size), jnp.float32)
    action = jax.random.normal(k_action, (batch, action_size), jnp.float32)

    out = critic_forward(state, action, prepared)
    out = jax.block_until_ready(out)

    ref = critic_forward_ref(state, action, params)
    assert out.shape == (batch, 1)
    assert jnp.allclose(out, ref, atol=1e-4, rtol=1e-4)

    print("KERNEL_OK")
</pallas_src>

<mosaic_0001>
module attributes {stable_mosaic.version = 11 : i64} {
  func.func @_critic_kernel(%arg0: i32, %arg1: memref<8x32xf32, #tpu.memory_space<vmem>>, %arg2: memref<8x8xf32, #tpu.memory_space<vmem>>, %arg3: memref<32x512xf32, #tpu.memory_space<vmem>>, %arg4: memref<1x512xf32, #tpu.memory_space<vmem>>, %arg5: memref<512x384xf32, #tpu.memory_space<vmem>>, %arg6: memref<8x384xf32, #tpu.memory_space<vmem>>, %arg7: memref<1x384xf32, #tpu.memory_space<vmem>>, %arg8: memref<1x384xf32, #tpu.memory_space<vmem>>, %arg9: memref<1x1xf32, #tpu.memory_space<smem>>, %arg10: memref<8x1xf32, #tpu.memory_space<vmem>>) attributes {dimension_semantics = [#tpu.dimension_semantics<parallel>], iteration_bounds = array<i64: 1>, scalar_prefetch = 0 : i64, scratch_operands = 0 : i64, tpu.core_type = #tpu.core_type<tc>, window_params = [{transform_indices = @transform_0, window_bounds = array<i64: 8, 32>}, {transform_indices = @transform_1, window_bounds = array<i64: 8, 8>}, {pipeline_mode = #tpu.pipeline_mode<synchronous>, transform_indices = @transform_2, window_bounds = array<i64: 32, 512>}, {pipeline_mode = #tpu.pipeline_mode<synchronous>, transform_indices = @transform_3, window_bounds = array<i64: 1, 512>}, {pipeline_mode = #tpu.pipeline_mode<synchronous>, transform_indices = @transform_4, window_bounds = array<i64: 512, 384>}, {pipeline_mode = #tpu.pipeline_mode<synchronous>, transform_indices = @transform_5, window_bounds = array<i64: 8, 384>}, {pipeline_mode = #tpu.pipeline_mode<synchronous>, transform_indices = @transform_6, window_bounds = array<i64: 1, 384>}, {pipeline_mode = #tpu.pipeline_mode<synchronous>, transform_indices = @transform_7, window_bounds = array<i64: 1, 384>}, {transform_indices = @transform_8, window_bounds = array<i64: 1, 1>}, {transform_indices = @transform_9, window_bounds = array<i64: 8, 1>}]} {
    %c0 = arith.constant 0 : index
    %c0_0 = arith.constant 0 : index
    %0 = vector.load %arg1[%c0, %c0_0] : memref<8x32xf32, #tpu.memory_space<vmem>>, vector<8x32xf32>
    %c0_1 = arith.constant 0 : index
    %c0_2 = arith.constant 0 : index
    %1 = vector.load %arg3[%c0_1, %c0_2] : memref<32x512xf32, #tpu.memory_space<vmem>>, vector<32x512xf32>
    %cst = arith.constant dense<0.000000e+00> : vector<8x512xf32>
    %2 = tpu.matmul %0, %1, %cst {dimension_numbers = #tpu.dot_dimension_numbers<[1], [0], [0], [1], [0, 0, 1, 1], [], []>} : vector<8x32xf32>, vector<32x512xf32>, vector<8x512xf32> -> vector<8x512xf32>
    %c0_3 = arith.constant 0 : index
    %c0_4 = arith.constant 0 : index
    %3 = vector.load %arg4[%c0_3, %c0_4] : memref<1x512xf32, #tpu.memory_space<vmem>>, vector<1x512xf32>
    %4 = vector.broadcast %3 : vector<1x512xf32> to vector<8x512xf32>
    %5 = arith.addf %2, %4 : vector<8x512xf32>
    %cst_5 = arith.constant 0.000000e+00 : f32
    %6 = vector.broadcast %cst_5 : f32 to vector<8x512xf32>
    %7 = arith.maximumf %5, %6 : vector<8x512xf32>
    %c0_6 = arith.constant 0 : index
    %c0_7 = arith.constant 0 : index
    %8 = vector.load %arg5[%c0_6, %c0_7] : memref<512x384xf32, #tpu.memory_space<vmem>>, vector<512x384xf32>
    %cst_8 = arith.constant dense<0.000000e+00> : vector<8x384xf32>
    %9 = tpu.matmul %7, %8, %cst_8 {dimension_numbers = #tpu.dot_dimension_numbers<[1], [0], [0], [1], [0, 0, 1, 1], [], []>} : vector<8x512xf32>, vector<512x384xf32>, vector<8x384xf32> -> vector<8x384xf32>
    %c0_9 = arith.constant 0 : index
    %c0_10 = arith.constant 0 : index
    %10 = vector.load %arg2[%c0_9, %c0_10] : memref<8x8xf32, #tpu.memory_space<vmem>>, vector<8x8xf32>
    %c0_11 = arith.constant 0 : index
    %c0_12 = arith.constant 0 : index
    %11 = vector.load %arg6[%c0_11, %c0_12] : memref<8x384xf32, #tpu.memory_space<vmem>>, vector<8x384xf32>
    %cst_13 = arith.constant dense<0.000000e+00> : vector<8x384xf32>
    %12 = tpu.matmul %10, %11, %cst_13 {dimension_numbers = #tpu.dot_dimension_numbers<[1], [0], [0], [1], [0, 0, 1, 1], [], []>} : vector<8x8xf32>, vector<8x384xf32>, vector<8x384xf32> -> vector<8x384xf32>
    %13 = arith.addf %9, %12 : vector<8x384xf32>
    %c0_14 = arith.constant 0 : index
    %c0_15 = arith.constant 0 : index
    %14 = vector.load %arg7[%c0_14, %c0_15] : memref<1x384xf32, #tpu.memory_space<vmem>>, vector<1x384xf32>
    %15 = vector.broadcast %14 : vector<1x384xf32> to vector<8x384xf32>
    %16 = arith.addf %13, %15 : vector<8x384xf32>
    %cst_16 = arith.constant 0.000000e+00 : f32
    %17 = vector.broadcast %cst_16 : f32 to vector<8x384xf32>
    %18 = arith.maximumf %16, %17 : vector<8x384xf32>
    %c0_17 = arith.constant 0 : index
    %c0_18 = arith.constant 0 : index
    %19 = vector.load %arg8[%c0_17, %c0_18] : memref<1x384xf32, #tpu.memory_space<vmem>>, vector<1x384xf32>
    %20 = vector.broadcast %19 : vector<1x384xf32> to vector<8x384xf32>
    %21 = arith.mulf %18, %20 : vector<8x384xf32>
    %cst_19 = arith.constant dense<0.000000e+00> : vector<8xf32>
    %22 = vector.multi_reduction <add>, %21, %cst_19 [1] : vector<8x384xf32> to vector<8xf32>
    %23 = vector.shape_cast %22 : vector<8xf32> to vector<8x1xf32>
    %c0_20 = arith.constant 0 : index
    %c0_21 = arith.constant 0 : index
    %24 = memref.load %arg9[%c0_20, %c0_21] : memref<1x1xf32, #tpu.memory_space<smem>>
    %25 = vector.broadcast %24 : f32 to vector<8x1xf32>
    %26 = arith.addf %23, %25 : vector<8x1xf32>
    %c0_22 = arith.constant 0 : index
    %c0_23 = arith.constant 0 : index
    %27 = vector.load %arg10[%c0_22, %c0_23] : memref<8x1xf32, #tpu.memory_space<vmem>>, vector<8x1xf32>
    tpu.vector_store %arg10[%c0_22, %c0_23], %26 {strides = array<i32>} : memref<8x1xf32, #tpu.memory_space<vmem>>, vector<8x1xf32>,
    return
  }
  func.func @transform_0(%arg0: i32) -> (i32, i32) {
    %c0_i32 = arith.constant 0 : i32
    %c0_i32_0 = arith.constant 0 : i32
    return %arg0, %c0_i32 : i32, i32
  }
  func.func @transform_1(%arg0: i32) -> (i32, i32) {
    %c0_i32 = arith.constant 0 : i32
    %c0_i32_0 = arith.constant 0 : i32
    return %arg0, %c0_i32 : i32, i32
  }
  func.func @transform_2(%arg0: i32) -> (i32, i32) {
    %c0_i32 = arith.constant 0 : i32
    %c0_i32_0 = arith.constant 0 : i32
    %c0_i32_1 = arith.constant 0 : i32
    return %c0_i32, %c0_i32_0 : i32, i32
  }
  func.func @transform_3(%arg0: i32) -> (i32, i32) {
    %c0_i32 = arith.constant 0 : i32
    %c0_i32_0 = arith.constant 0 : i32
    %c0_i32_1 = arith.constant 0 : i32
    return %c0_i32, %c0_i32_0 : i32, i32
  }
  func.func @transform_4(%arg0: i32) -> (i32, i32) {
    %c0_i32 = arith.constant 0 : i32
    %c0_i32_0 = arith.constant 0 : i32
    %c0_i32_1 = arith.constant 0 : i32
    return %c0_i32, %c0_i32_0 : i32, i32
  }
  func.func @transform_5(%arg0: i32) -> (i32, i32) {
    %c0_i32 = arith.constant 0 : i32
    %c0_i32_0 = arith.constant 0 : i32
    %c0_i32_1 = arith.constant 0 : i32
    return %c0_i32, %c0_i32_0 : i32, i32
  }
  func.func @transform_6(%arg0: i32) -> (i32, i32) {
    %c0_i32 = arith.constant 0 : i32
    %c0_i32_0 = arith.constant 0 : i32
    %c0_i32_1 = arith.constant 0 : i32
    return %c0_i32, %c0_i32_0 : i32, i32
  }
  func.func @transform_7(%arg0: i32) -> (i32, i32) {
    %c0_i32 = arith.constant 0 : i32
    %c0_i32_0 = arith.constant 0 : i32
    %c0_i32_1 = arith.constant 0 : i32
    return %c0_i32, %c0_i32_0 : i32, i32
  }
  func.func @transform_8(%arg0: i32) -> (i32, i32) {
    %c0_i32 = arith.constant 0 : i32
    %c0_i32_0 = arith.constant 0 : i32
    %c0_i32_1 = arith.constant 0 : i32
    return %c0_i32, %c0_i32_0 : i32, i32
  }
  func.func @transform_9(%arg0: i32) -> (i32, i32) {
    %c0_i32 = arith.constant 0 : i32
    %c0_i32_0 = arith.constant 0 : i32
    return %arg0, %c0_i32 : i32, i32
  }
}

</mosaic_0001>

<llo_original>
// kernel: _critic_forward_impl.1
$region0: #{_critic_forward_impl.1}
  #allocation0 [shape = 'u32[]', space=smem, size = 0x4, offset = 0x4, fixed_abs, tag = 'smem constant byte address 0x4 - core index']
  #allocation1 [shape = 'u32[144,128]{1,0:T(1,128)}', space=vmem, size = 0x12000, scoped, tag = 'internal scratch']
  #allocation2 [shape = 'f32[1,1]{1,0:T(1,128)S(6)}', space=smem, size = 0x200, scoped, tag = 'scoped memory for _critic_forward_impl.1']
  %s0 = inlined_call_operand.hbm [shape: f32[8,32], index: 0, kind: input, shape index: {}]
  %s1 = inlined_call_operand.hbm [shape: f32[8,8], index: 1, kind: input, shape index: {}]
  %s2 = inlined_call_operand.hbm [shape: f32[32,512], index: 2, kind: input, shape index: {}]
  %s3 = inlined_call_operand.vmem [shape: f32[1,512], index: 3, kind: input, shape index: {}]
  %s4 = inlined_call_operand.hbm [shape: f32[512,384], index: 4, kind: input, shape index: {}]
  %s5 = inlined_call_operand.hbm [shape: f32[8,384], index: 5, kind: input, shape index: {}]
  %s6 = inlined_call_operand.vmem [shape: f32[1,384], index: 6, kind: input, shape index: {}]
  %s7 = inlined_call_operand.vmem [shape: f32[1,384], index: 7, kind: input, shape index: {}]
  %s8 = inlined_call_operand.<no memory space> [shape: f32[1,1], index: 8, kind: input, shape index: {}]
  %s9 = inlined_call_operand.vmem [shape: f32[8,1], index: 9, kind: output, shape index: {}]
  %s10 = sld [smem:[#allocation0]]
  $region66: #{_critic_forward_impl.1} parent=0
    _
  %s12 = ssub.s32 1, %s10
  %s13 = scalar_select 0, %s12, %s10
  %14 = sst [smem:[#allocation2]] %s8
  $region1: #{_critic_forward_impl.1} parent=0
    #allocation3 [shape = 'u8[4096]{0}', space=vmem, size = 0x1000, scoped, tag = 'input window, operand 0, single buffered']
    #allocation4 [shape = 's32[1]{0}', space=sflag, size = 0x4, scoped, tag = 'scoped memory for _critic_forward_impl.1']
    #allocation5 [shape = 'u8[4096]{0}', space=vmem, size = 0x1000, scoped, tag = 'input window, operand 1, single buffered']
    #allocation6 [shape = 's32[1]{0}', space=sflag, size = 0x4, scoped, tag = 'scoped memory for _critic_forward_impl.1']
    #allocation7 [shape = 'u8[65536]{0}', space=vmem, size = 0x10000, scoped, tag = 'input window, operand 2, single buffered']
    #allocation8 [shape = 'u8[786432]{0}', space=vmem, size = 0xc0000, scoped, tag = 'input window, operand 4, single buffered']
    #allocation9 [shape = 's32[1]{0}', space=sflag, size = 0x4, scoped, tag = 'scoped memory for _critic_forward_impl.1']
    #allocation10 [shape = 'u8[12288]{0}', space=vmem, size = 0x3000, scoped, tag = 'input window, operand 5, single buffered']
    %15 = vsyncpa [#allocation4], 0
    %16 = vsyncpa [#allocation6], 0
    %17 = vsyncpa [#allocation9], 0
    // Predicated region
    $region2: #{_critic_forward_impl.1} parent=1 // pred_check
      _
    $region3: #{_critic_forward_impl.1} parent=1 // pred_check_branch
      %19 = sbr.rel (0) target = $region5
    $region4: #{_critic_forward_impl.1} parent=1 // pred_region
      %s21 = ssub.s32 128, 128
      %22 = vsyncadd [#allocation4], %s21
      %s24 = sshll.u32 [#allocation3], 4
      %s25 = int_to_ptr.vmem [resolvable:$true] %s24
      %27 = dma.hbm_to_vmem [thread:$0]  %s0, 128, %s25, [#allocation4]
    $region5: #{_critic_forward_impl.1} parent=1 // pred_fallthru
      _
    // Predicated region
    $region6: #{_critic_forward_impl.1} parent=1 // pred_check
      _
    $region7: #{_critic_forward_impl.1} parent=1 // pred_check_branch
      %29 = sbr.rel (0) target = $region9
    $region8: #{_critic_forward_impl.1} parent=1 // pred_region
      %s31 = ssub.s32 128, 128
      %32 = vsyncadd [#allocation6], %s31
      %s34 = sshll.u32 [#allocation5], 4
      %s35 = int_to_ptr.vmem [resolvable:$true] %s34
      %37 = dma.hbm_to_vmem [thread:$0]  %s1, 128, %s35, [#allocation6]
    $region9: #{_critic_forward_impl.1} parent=1 // pred_fallthru
      _
    // Predicated region
    $region10: #{_critic_forward_impl.1} parent=1 // pred_check
      _
    $region11: #{_critic_forward_impl.1} parent=1 // pred_check_branch
      %39 = sbr.rel (0) target = $region13
    $region12: #{_critic_forward_impl.1} parent=1 // pred_region
      %s41 = ssub.s32 2048, 2048
      %42 = vsyncadd [#allocation6], %s41
      %s43 = sshll.u32 [#allocation7], 4
      %s44 = int_to_ptr.vmem [resolvable:$true] %s43
      %49 = dma.hbm_to_vmem [thread:$0]  %s2, 2048, %s44, [#allocation6], 512, 512, 32
    $region13: #{_critic_forward_impl.1} parent=1 // pred_fallthru
      _
    // Predicated region
    $region14: #{_critic_forward_impl.1} parent=1 // pred_check
      _
    $region15: #{_critic_forward_impl.1} parent=1 // pred_check_branch
      %51 = sbr.rel (0) target = $region17
    $region16: #{_critic_forward_impl.1} parent=1 // pred_region
      _
    $region17: #{_critic_forward_impl.1} parent=1 // pred_fallthru
      _
    // Predicated region
    $region18: #{_critic_forward_impl.1} parent=1 // pred_check
      _
    $region19: #{_critic_forward_impl.1} parent=1 // pred_check_branch
      %53 = sbr.rel (0) target = $region21
    $region20: #{_critic_forward_impl.1} parent=1 // pred_region
      %s55 = ssub.s32 24576, 24576
      %56 = vsyncadd [#allocation9], %s55
      %s57 = sshll.u32 [#allocation8], 4
      %s58 = int_to_ptr.vmem [resolvable:$true] %s57
      %63 = dma.hbm_to_vmem [thread:$0]  %s4, 24576, %s58, [#allocation9], 384, 384, 24
    $region21: #{_critic_forward_impl.1} parent=1 // pred_fallthru
      _
    // Predicated region
    $region22: #{_critic_forward_impl.1} parent=1 // pred_check
      _
    $region23: #{_critic_forward_impl.1} parent=1 // pred_check_branch
      %65 = sbr.rel (0) target = $region25
    $region24: #{_critic_forward_impl.1} parent=1 // pred_region
      %s67 = ssub.s32 384, 384
      %68 = vsyncadd [#allocation9], %s67
      %s70 = sshll.u32 [#allocation10], 4
      %s71 = int_to_ptr.vmem [resolvable:$true] %s70
      %73 = dma.hbm_to_vmem [thread:$0]  %s5, 384, %s71, [#allocation9]
    $region25: #{_critic_forward_impl.1} parent=1 // pred_fallthru
      _
    // Predicated region
    $region26: #{_critic_forward_impl.1} parent=1 // pred_check
      _
    $region27: #{_critic_forward_impl.1} parent=1 // pred_check_branch
      %75 = sbr.rel (0) target = $region29
    $region28: #{_critic_forward_impl.1} parent=1 // pred_region
      _
    $region29: #{_critic_forward_impl.1} parent=1 // pred_fallthru
      _
    // Predicated region
    $region30: #{_critic_forward_impl.1} parent=1 // pred_check
      _
    $region31: #{_critic_forward_impl.1} parent=1 // pred_check_branch
      %77 = sbr.rel (0) target = $region33
    $region32: #{_critic_forward_impl.1} parent=1 // pred_region
      _
    $region33: #{_critic_forward_impl.1} parent=1 // pred_fallthru
      _
    // Predicated region
    $region34: #{_critic_forward_impl.1} parent=1 // pred_check
      _
    $region35: #{_critic_forward_impl.1} parent=1 // pred_check_branch
      %79 = sbr.rel (0) target = $region37
    $region36: #{_critic_forward_impl.1} parent=1 // pred_region
      _
    $region37: #{_critic_forward_impl.1} parent=1 // pred_fallthru
      _
    // Predicated region
    $region38: #{_critic_forward_impl.1} parent=1 // pred_check
      _
    $region39: #{_critic_forward_impl.1} parent=1 // pred_check_branch
      %81 = sbr.rel (0) target = $region41
    $region40: #{_critic_forward_impl.1} parent=1 // pred_region
      %82 = dma.done [#allocation4], 128
    $region41: #{_critic_forward_impl.1} parent=1 // pred_fallthru
      _
    // Predicated region
    $region42: #{_critic_forward_impl.1} parent=1 // pred_check
      _
    $region43: #{_critic_forward_impl.1} parent=1 // pred_check_branch
      %84 = sbr.rel (0) target = $region45
    $region44: #{_critic_forward_impl.1} parent=1 // pred_region
      %85 = dma.done [#allocation6], 128
    $region45: #{_critic_forward_impl.1} parent=1 // pred_fallthru
      _
    // Predicated region
    $region46: #{_critic_forward_impl.1} parent=1 // pred_check
      _
    $region47: #{_critic_forward_impl.1} parent=1 // pred_check_branch
      %87 = sbr.rel (0) target = $region49
    $region48: #{_critic_forward_impl.1} parent=1 // pred_region
      %88 = dma.done [#allocation6], 2048
    $region49: #{_critic_forward_impl.1} parent=1 // pred_fallthru
      _
    // Predicated region
    $region50: #{_critic_forward_impl.1} parent=1 // pred_check
      _
    $region51: #{_critic_forward_impl.1} parent=1 // pred_check_branch
      %90 = sbr.rel (0) target = $region53
    $region52: #{_critic_forward_impl.1} parent=1 // pred_region
      %91 = dma.done [#allocation9], 24576
    $region53: #{_critic_forward_impl.1} parent=1 // pred_fallthru
      _
    // Predicated region
    $region54: #{_critic_forward_impl.1} parent=1 // pred_check
      _
    $region55: #{_critic_forward_impl.1} parent=1 // pred_check_branch
      %93 = sbr.rel (0) target = $region57
    $region56: #{_critic_forward_impl.1} parent=1 // pred_region
      %94 = dma.done [#allocation9], 384
    $region57: #{_critic_forward_impl.1} parent=1 // pred_fallthru
      _
    %v95 = vld [vmem:[#allocation3] sm:$0xff]
    %v96 = vld [vmem:[#allocation7] sm:$0xff]
    %v97 = vld [vmem:[#allocation7 + $0x8] sm:$0xff]
    %v98 = vld [vmem:[#allocation7 + $0x10] sm:$0xff]
    %v99 = vld [vmem:[#allocation7 + $0x18] sm:$0xff]
    %v100 = vld [vmem:[#allocation7 + $0x20] sm:$0xff]
    %v101 = vld [vmem:[#allocation7 + $0x28] sm:$0xff]
    %v102 = vld [vmem:[#allocation7 + $0x30] sm:$0xff]
    %v103 = vld [vmem:[#allocation7 + $0x38] sm:$0xff]
    %v104 = vld [vmem:[#allocation7 + $0x40] sm:$0xff]
    %v105 = vld [vmem:[#allocation7 + $0x48] sm:$0xff]
    %v106 = vld [vmem:[#allocation7 + $0x50] sm:$0xff]
    %v107 = vld [vmem:[#allocation7 + $0x58] sm:$0xff]
    %v108 = vld [vmem:[#allocation7 + $0x60] sm:$0xff]
    %v109 = vld [vmem:[#allocation7 + $0x68] sm:$0xff]
    %v110 = vld [vmem:[#allocation7 + $0x70] sm:$0xff]
    %v111 = vld [vmem:[#allocation7 + $0x78] sm:$0xff]
    %v112 = vld [vmem:[%s3] sm:$0xf]
    %v114 = vlaneseq
    %v115 = vshrl.u32 %v114, 7
    %v116 = vsub.s32 0, %v115
    %v117 = vrot.slane %v112, %v116
    %v118 = vlaneseq
    %v119 = vshrl.u32 %v118, 7
    %v120 = vsub.s32 1, %v119
    %v121 = vrot.slane %v112, %v120
    %v122 = vlaneseq
    %v123 = vshrl.u32 %v122, 7
    %v124 = vsub.s32 2, %v123
    %v125 = vrot.slane %v112, %v124
    %v126 = vlaneseq
    %v127 = vshrl.u32 %v126, 7
    %v128 = vsub.s32 3, %v127
    %v129 = vrot.slane %v112, %v128
    %vm134 = vcmask 261120
    %v136 = vsel %vm134, %v95, 0
    %138 = vmatprep.subr.mxu0 0.0
    %139 = vmatpush1.msra.mxu0 0.0
    %140 = vmatprep.subr.mxu0 0.0
    %141 = vmatpush1.msra.mxu0 0.0
    %142 = vmatprep.subr.mxu0 0.0
    %143 = vmatpush1.msra.mxu0 0.0
    %144 = vmatprep.subr.mxu0 0.0
    %145 = vmatpush1.msra.mxu0 0.0
    %146 = vmatprep.subr.mxu0 0.0
    %147 = vmatpush1.msra.mxu0 0.0
    %148 = vmatprep.subr.mxu0 0.0
    %149 = vmatpush1.msra.mxu0 0.0
    %150 = vmatprep.subr.mxu0 0.0
    %151 = vmatpush1.msra.mxu0 0.0
    %152 = vmatprep.subr.mxu0 0.0
    %153 = vmatpush1.msra.mxu0 0.0
    %154 = vmatprep.subr.mxu0 0.0
    %155 = vmatpush1.msra.mxu0 0.0
    %156 = vmatprep.subr.mxu0 0.0
    %157 = vmatpush1.msra.mxu0 0.0
    %158 = vmatprep.subr.mxu0 0.0
    %159 = vmatpush1.msra.mxu0 0.0
    %160 = vmatprep.subr.mxu0 0.0
    %161 = vmatpush1.msra.mxu0 0.0
    %162 = vmatprep.subr.mxu0 %v109
    %163 = vmatpush1.msra.mxu0 %v108
    %164 = vmatprep.subr.mxu0 %v105
    %165 = vmatpush1.msra.mxu0 %v104
    %166 = vmatprep.subr.mxu0 %v101
    %167 = vmatpush1.msra.mxu0 %v100
    %168 = vmatprep.subr.mxu0 %v97
    %169 = vmatpush1.msra.mxu0 %v96
    %170 = vmatprep.subr.mxu0 0.0
    %171 = vmatpush2.msra.mxu0 0.0
    %172 = vmatprep.subr.mxu0 0.0
    %173 = vmatpush2.msra.mxu0 0.0
    %174 = vmatprep.subr.mxu0 0.0
    %175 = vmatpush2.msra.mxu0 0.0
    %176 = vmatprep.subr.mxu0 0.0
    %177 = vmatpush2.msra.mxu0 0.0
    %178 = vmatprep.subr.mxu0 0.0
    %179 = vmatpush2.msra.mxu0 0.0
    %180 = vmatprep.subr.mxu0 0.0
    %181 = vmatpush2.msra.mxu0 0.0
    %182 = vmatprep.subr.mxu0 0.0
    %183 = vmatpush2.msra.mxu0 0.0
    %184 = vmatprep.subr.mxu0 0.0
    %185 = vmatpush2.msra.mxu0 0.0
    %186 = vmatprep.subr.mxu0 0.0
    %187 = vmatpush2.msra.mxu0 0.0
    %188 = vmatprep.subr.mxu0 0.0
    %189 = vmatpush2.msra.mxu0 0.0
    %190 = vmatprep.subr.mxu0 0.0
    %191 = vmatpush2.msra.mxu0 0.0
    %192 = vmatprep.subr.mxu0 0.0
    %193 = vmatpush2.msra.mxu0 0.0
    %194 = vmatprep.subr.mxu0 0.0
    %195 = vmatpush2.msra.mxu0 0.0
    %196 = vmatprep.subr.mxu0 0.0
    %197 = vmatpush2.msra.mxu0 0.0
    %198 = vmatprep.subr.mxu0 0.0
    %199 = vmatpush2.msra.mxu0 0.0
    %200 = vmatprep.subr.mxu0 0.0
    %201 = vmatpush2.msra.mxu0 0.0
    %202 = vmatprep.mubr.f32.mxu0 0.0
    %203 = vmatmul.mubr.f32.gmra.mxu0 %v136
    %v204 = vpop.f32.mrf.mxu0
    %v205 = vadd.f32 %v117, %v204
    %v206 = vpop.f32.mrf.mxu0
    %v207 = vadd.f32 %v121, %v206
    %208 = vdwg.mxu0
    %209 = vmatprep.subr.mxu0 0.0
    %210 = vmatpush1.msra.mxu0 0.0
    %211 = vmatprep.subr.mxu0 0.0
    %212 = vmatpush1.msra.mxu0 0.0
    %213 = vmatprep.subr.mxu0 0.0
    %214 = vmatpush1.msra.mxu0 0.0
    %215 = vmatprep.subr.mxu0 0.0
    %216 = vmatpush1.msra.mxu0 0.0
    %217 = vmatprep.subr.mxu0 0.0
    %218 = vmatpush1.msra.mxu0 0.0
    %219 = vmatprep.subr.mxu0 0.0
    %220 = vmatpush1.msra.mxu0 0.0
    %221 = vmatprep.subr.mxu0 0.0
    %222 = vmatpush1.msra.mxu0 0.0
    %223 = vmatprep.subr.mxu0 0.0
    %224 = vmatpush1.msra.mxu0 0.0
    %225 = vmatprep.subr.mxu0 0.0
    %226 = vmatpush1.msra.mxu0 0.0
    %227 = vmatprep.subr.mxu0 0.0
    %228 = vmatpush1.msra.mxu0 0.0
    %229 = vmatprep.subr.mxu0 0.0
    %230 = vmatpush1.msra.mxu0 0.0
    %231 = vmatprep.subr.mxu0 0.0
    %232 = vmatpush1.msra.mxu0 0.0
    %233 = vmatprep.subr.mxu0 %v111
    %234 = vmatpush1.msra.mxu0 %v110
    %235 = vmatprep.subr.mxu0 %v107
    %236 = vmatpush1.msra.mxu0 %v106
    %237 = vmatprep.subr.mxu0 %v103
    %238 = vmatpush1.msra.mxu0 %v102
    %239 = vmatprep.subr.mxu0 %v99
    %240 = vmatpush1.msra.mxu0 %v98
    %241 = vmatprep.subr.mxu0 0.0
    %242 = vmatpush2.msra.mxu0 0.0
    %243 = vmatprep.subr.mxu0 0.0
    %244 = vmatpush2.msra.mxu0 0.0
    %245 = vmatprep.subr.mxu0 0.0
    %246 = vmatpush2.msra.mxu0 0.0
    %247 = vmatprep.subr.mxu0 0.0
    %248 = vmatpush2.msra.mxu0 0.0
    %249 = vmatprep.subr.mxu0 0.0
    %250 = vmatpush2.msra.mxu0 0.0
    %251 = vmatprep.subr.mxu0 0.0
    %252 = vmatpush2.msra.mxu0 0.0
    %253 = vmatprep.subr.mxu0 0.0
    %254 = vmatpush2.msra.mxu0 0.0
    %255 = vmatprep.subr.mxu0 0.0
    %256 = vmatpush2.msra.mxu0 0.0
    %257 = vmatprep.subr.mxu0 0.0
    %258 = vmatpush2.msra.mxu0 0.0
    %259 = vmatprep.subr.mxu0 0.0
    %260 = vmatpush2.msra.mxu0 0.0
    %261 = vmatprep.subr.mxu0 0.0
    %262 = vmatpush2.msra.mxu0 0.0
    %263 = vmatprep.subr.mxu0 0.0
    %264 = vmatpush2.msra.mxu0 0.0
    %265 = vmatprep.subr.mxu0 0.0
    %266 = vmatpush2.msra.mxu0 0.0
    %267 = vmatprep.subr.mxu0 0.0
    %268 = vmatpush2.msra.mxu0 0.0
    %269 = vmatprep.subr.mxu0 0.0
    %270 = vmatpush2.msra.mxu0 0.0
    %271 = vmatprep.subr.mxu0 0.0
    %272 = vmatpush2.msra.mxu0 0.0
    %273 = vmatprep.mubr.f32.mxu0 0.0
    %274 = vmatmul.mubr.f32.gmra.mxu0 %v136
    %v275 = vpop.f32.mrf.mxu0
    %v276 = vadd.f32 %v125, %v275
    %v277 = vpop.f32.mrf.mxu0
    %v278 = vadd.f32 %v129, %v277
    %279 = vdwg.mxu0
    %v280 = vmax.f32 %v205, 0.0
    %v281 = vmax.f32 %v207, 0.0
    %v282 = vmax.f32 %v276, 0.0
    %v283 = vmax.f32 %v278, 0.0
    %v284 = vld [vmem:[#allocation8] sm:$0xff]
    %v285 = vld [vmem:[#allocation8 + $0x8] sm:$0xff]
    %v286 = vld [vmem:[#allocation8 + $0x10] sm:$0xff]
    %v287 = vld [vmem:[#allocation8 + $0x18] sm:$0xff]
    %v288 = vld [vmem:[#allocation8 + $0x20] sm:$0xff]
    %v289 = vld [vmem:[#allocation8 + $0x28] sm:$0xff]
    %v290 = vld [vmem:[#allocation8 + $0x30] sm:$0xff]
    %v291 = vld [vmem:[#allocation8 + $0x38] sm:$0xff]
    %v292 = vld [vmem:[#allocation8 + $0x40] sm:$0xff]
    %v293 = vld [vmem:[#allocation8 + $0x48] sm:$0xff]
    %v294 = vld [vmem:[#allocation8 + $0x50] sm:$0xff]
    %v295 = vld [vmem:[#allocation8 + $0x58] sm:$0xff]
    %v296 = vld [vmem:[#allocation8 + $0x60] sm:$0xff]
    %v297 = vld [vmem:[#allocation8 + $0x68] sm:$0xff]
    %v298 = vld [vmem:[#allocation8 + $0x70] sm:$0xff]
    %v299 = vld [vmem:[#allocation8 + $0x78] sm:$0xff]
    %v300 = vld [vmem:[#allocation8 + $0x80] sm:$0xff]
    %v301 = vld [vmem:[#allocation8 + $0x88] sm:$0xff]
    %v302 = vld [vmem:[#allocation8 + $0x90] sm:$0xff]
    %v303 = vld [vmem:[#allocation8 + $0x98] sm:$0xff]
    %v304 = vld [vmem:[#allocation8 + $0xa0] sm:$0xff]
    %v305 = vld [vmem:[#allocation8 + $0xa8] sm:$0xff]
    %v306 = vld [vmem:[#allocation8 + $0xb0] sm:$0xff]
    %v307 = vld [vmem:[#allocation8 + $0xb8] sm:$0xff]
    %v308 = vld [vmem:[#allocation8 + $0xc0] sm:$0xff]
    %v309 = vld [vmem:[#allocation8 + $0xc8] sm:$0xff]
    %v310 = vld [vmem:[#allocation8 + $0xd0] sm:$0xff]
    %v311 = vld [vmem:[#allocation8 + $0xd8] sm:$0xff]
    %v312 = vld [vmem:[#allocation8 + $0xe0] sm:$0xff]
    %v313 = vld [vmem:[#allocation8 + $0xe8] sm:$0xff]
    %v314 = vld [vmem:[#allocation8 + $0xf0] sm:$0xff]
    %v315 = vld [vmem:[#allocation8 + $0xf8] sm:$0xff]
    %v316 = vld [vmem:[#allocation8 + $0x100] sm:$0xff]
    %v317 = vld [vmem:[#allocation8 + $0x108] sm:$0xff]
    %v318 = vld [vmem:[#allocation8 + $0x110] sm:$0xff]
    %v319 = vld [vmem:[#allocation8 + $0x118] sm:$0xff]
    %v320 = vld [vmem:[#allocation8 + $0x120] sm:$0xff]
    %v321 = vld [vmem:[#allocation8 + $0x128] sm:$0xff]
    %v322 = vld [vmem:[#allocation8 + $0x130] sm:$0xff]
    %v323 = vld [vmem:[#allocation8 + $0x138] sm:$0xff]
    %v324 = vld [vmem:[#allocation8 + $0x140] sm:$0xff]
    %v325 = vld [vmem:[#allocation8 + $0x148] sm:$0xff]
    %v326 = vld [vmem:[#allocation8 + $0x150] sm:$0xff]
    %v327 = vld [vmem:[#allocation8 + $0x158] sm:$0xff]
    %v328 = vld [vmem:[#allocation8 + $0x160] sm:$0xff]
    %v329 = vld [vmem:[#allocation8 + $0x168] sm:$0xff]
    %v330 = vld [vmem:[#allocation8 + $0x170] sm:$0xff]
    %v331 = vld [vmem:[#allocation8 + $0x178] sm:$0xff]
    %v332 = vld [vmem:[#allocation8 + $0x180] sm:$0xff]
    %v333 = vld [vmem:[#allocation8 + $0x188] sm:$0xff]
    %v334 = vld [vmem:[#allocation8 + $0x190] sm:$0xff]
    %v335 = vld [vmem:[#allocation8 + $0x198] sm:$0xff]
    %v336 = vld [vmem:[#allocation8 + $0x1a0] sm:$0xff]
    %v337 = vld [vmem:[#allocation8 + $0x1a8] sm:$0xff]
    %v338 = vld [vmem:[#allocation8 + $0x1b0] sm:$0xff]
    %v339 = vld [vmem:[#allocation8 + $0x1b8] sm:$0xff]
    %v340 = vld [vmem:[#allocation8 + $0x1c0] sm:$0xff]
    %v341 = vld [vmem:[#allocation8 + $0x1c8] sm:$0xff]
    %v342 = vld [vmem:[#allocation8 + $0x1d0] sm:$0xff]
    %v343 = vld [vmem:[#allocation8 + $0x1d8] sm:$0xff]
    %v344 = vld [vmem:[#allocation8 + $0x1e0] sm:$0xff]
    %v345 = vld [vmem:[#allocation8 + $0x1e8] sm:$0xff]
    %v346 = vld [vmem:[#allocation8 + $0x1f0] sm:$0xff]
    %v347 = vld [vmem:[#allocation8 + $0x1f8] sm:$0xff]
    %v348 = vld [vmem:[#allocation8 + $0x200] sm:$0xff]
    %v349 = vld [vmem:[#allocation8 + $0x208] sm:$0xff]
    %v350 = vld [vmem:[#allocation8 + $0x210] sm:$0xff]
    %v351 = vld [vmem:[#allocation8 + $0x218] sm:$0xff]
    %v352 = vld [vmem:[#allocation8 + $0x220] sm:$0xff]
    %v353 = vld [vmem:[#allocation8 + $0x228] sm:$0xff]
    %v354 = vld [vmem:[#allocation8 + $0x230] sm:$0xff]
    %v355 = vld [vmem:[#allocation8 + $0x238] sm:$0xff]
    %v356 = vld [vmem:[#allocation8 + $0x240] sm:$0xff]
    %v357 = vld [vmem:[#allocation8 + $0x248] sm:$0xff]
    %v358 = vld [vmem:[#allocation8 + $0x250] sm:$0xff]
    %v359 = vld [vmem:[#allocation8 + $0x258] sm:$0xff]
    %v360 = vld [vmem:[#allocation8 + $0x260] sm:$0xff]
    %v361 = vld [vmem:[#allocation8 + $0x268] sm:$0xff]
    %v362 = vld [vmem:[#allocation8 + $0x270] sm:$0xff]
    %v363 = vld [vmem:[#allocation8 + $0x278] sm:$0xff]
    %v364 = vld [vmem:[#allocation8 + $0x280] sm:$0xff]
    %v365 = vld [vmem:[#allocation8 + $0x288] sm:$0xff]
    %v366 = vld [vmem:[#allocation8 + $0x290] sm:$0xff]
    %v367 = vld [vmem:[#allocation8 + $0x298] sm:$0xff]
    %v368 = vld [vmem:[#allocation8 + $0x2a0] sm:$0xff]
    %v369 = vld [vmem:[#allocation8 + $0x2a8] sm:$0xff]
    %v370 = vld [vmem:[#allocation8 + $0x2b0] sm:$0xff]
    %v371 = vld [vmem:[#allocation8 + $0x2b8] sm:$0xff]
    %v372 = vld [vmem:[#allocation8 + $0x2c0] sm:$0xff]
    %v373 = vld [vmem:[#allocation8 + $0x2c8] sm:$0xff]
    %v374 = vld [vmem:[#allocation8 + $0x2d0] sm:$0xff]
    %v375 = vld [vmem:[#allocation8 + $0x2d8] sm:$0xff]
    %v376 = vld [vmem:[#allocation8 + $0x2e0] sm:$0xff]
    %v377 = vld [vmem:[#allocation8 + $0x2e8] sm:$0xff]
    %v378 = vld [vmem:[#allocation8 + $0x2f0] sm:$0xff]
    %v379 = vld [vmem:[#allocation8 + $0x2f8] sm:$0xff]
    %v380 = vld [vmem:[#allocation8 + $0x300] sm:$0xff]
    %v381 = vld [vmem:[#allocation8 + $0x308] sm:$0xff]
    %v382 = vld [vmem:[#allocation8 + $0x310] sm:$0xff]
    %v383 = vld [vmem:[#allocation8 + $0x318] sm:$0xff]
    %v384 = vld [vmem:[#allocation8 + $0x320] sm:$0xff]
    %v385 = vld [vmem:[#allocation8 + $0x328] sm:$0xff]
    %v386 = vld [vmem:[#allocation8 + $0x330] sm:$0xff]
    %v387 = vld [vmem:[#allocation8 + $0x338] sm:$0xff]
    %v388 = vld [vmem:[#allocation8 + $0x340] sm:$0xff]
    %v389 = vld [vmem:[#allocation8 + $0x348] sm:$0xff]
    %v390 = vld [vmem:[#allocation8 + $0x350] sm:$0xff]
    %v391 = vld [vmem:[#allocation8 + $0x358] sm:$0xff]
    %v392 = vld [vmem:[#allocation8 + $0x360] sm:$0xff]
    %v393 = vld [vmem:[#allocation8 + $0x368] sm:$0xff]
    %v394 = vld [vmem:[#allocation8 + $0x370] sm:$0xff]
    %v395 = vld [vmem:[#allocation8 + $0x378] sm:$0xff]
    %v396 = vld [vmem:[#allocation8 + $0x380] sm:$0xff]
    %v397 = vld [vmem:[#allocation8 + $0x388] sm:$0xff]
    %v398 = vld [vmem:[#allocation8 + $0x390] sm:$0xff]
    %v399 = vld [vmem:[#allocation8 + $0x398] sm:$0xff]
    %v400 = vld [vmem:[#allocation8 + $0x3a0] sm:$0xff]
    %v401 = vld [vmem:[#allocation8 + $0x3a8] sm:$0xff]
    %v402 = vld [vmem:[#allocation8 + $0x3b0] sm:$0xff]
    %v403 = vld [vmem:[#allocation8 + $0x3b8] sm:$0xff]
    %v404 = vld [vmem:[#allocation8 + $0x3c0] sm:$0xff]
    %v405 = vld [vmem:[#allocation8 + $0x3c8] sm:$0xff]
    %v406 = vld [vmem:[#allocation8 + $0x3d0] sm:$0xff]
    %v407 = vld [vmem:[#allocation8 + $0x3d8] sm:$0xff]
    %v408 = vld [vmem:[#allocation8 + $0x3e0] sm:$0xff]
    %v409 = vld [vmem:[#allocation8 + $0x3e8] sm:$0xff]
    %v410 = vld [vmem:[#allocation8 + $0x3f0] sm:$0xff]
    %v411 = vld [vmem:[#allocation8 + $0x3f8] sm:$0xff]
    %v412 = vld [vmem:[#allocation8 + $0x400] sm:$0xff]
    %v413 = vld [vmem:[#allocation8 + $0x408] sm:$0xff]
    %v414 = vld [vmem:[#allocation8 + $0x410] sm:$0xff]
    %v415 = vld [vmem:[#allocation8 + $0x418] sm:$0xff]
    %v416 = vld [vmem:[#allocation8 + $0x420] sm:$0xff]
    %v417 = vld [vmem:[#allocation8 + $0x428] sm:$0xff]
    %v418 = vld [vmem:[#allocation8 + $0x430] sm:$0xff]
    %v419 = vld [vmem:[#allocation8 + $0x438] sm:$0xff]
    %v420 = vld [vmem:[#allocation8 + $0x440] sm:$0xff]
    %v421 = vld [vmem:[#allocation8 + $0x448] sm:$0xff]
    %v422 = vld [vmem:[#allocation8 + $0x450] sm:$0xff]
    %v423 = vld [vmem:[#allocation8 + $0x458] sm:$0xff]
    %v424 = vld [vmem:[#allocation8 + $0x460] sm:$0xff]
    %v425 = vld [vmem:[#allocation8 + $0x468] sm:$0xff]
    %v426 = vld [vmem:[#allocation8 + $0x470] sm:$0xff]
    %v427 = vld [vmem:[#allocation8 + $0x478] sm:$0xff]
    %v428 = vld [vmem:[#allocation8 + $0x480] sm:$0xff]
    %v429 = vld [vmem:[#allocation8 + $0x488] sm:$0xff]
    %v430 = vld [vmem:[#allocation8 + $0x490] sm:$0xff]
    %v431 = vld [vmem:[#allocation8 + $0x498] sm:$0xff]
    %v432 = vld [vmem:[#allocation8 + $0x4a0] sm:$0xff]
    %v433 = vld [vmem:[#allocation8 + $0x4a8] sm:$0xff]
    %v434 = vld [vmem:[#allocation8 + $0x4b0] sm:$0xff]
    %v435 = vld [vmem:[#allocation8 + $0x4b8] sm:$0xff]
    %v436 = vld [vmem:[#allocation8 + $0x4c0] sm:$0xff]
    %v437 = vld [vmem:[#allocation8 + $0x4c8] sm:$0xff]
    %v438 = vld [vmem:[#allocation8 + $0x4d0] sm:$0xff]
    %v439 = vld [vmem:[#allocation8 + $0x4d8] sm:$0xff]
    %v440 = vld [vmem:[#allocation8 + $0x4e0] sm:$0xff]
    %v441 = vld [vmem:[#allocation8 + $0x4e8] sm:$0xff]
    %v442 = vld [vmem:[#allocation8 + $0x4f0] sm:$0xff]
    %v443 = vld [vmem:[#allocation8 + $0x4f8] sm:$0xff]
    %v444 = vld [vmem:[#allocation8 + $0x500] sm:$0xff]
    %v445 = vld [vmem:[#allocation8 + $0x508] sm:$0xff]
    %v446 = vld [vmem:[#allocation8 + $0x510] sm:$0xff]
    %v447 = vld [vmem:[#allocation8 + $0x518] sm:$0xff]
    %v448 = vld [vmem:[#allocation8 + $0x520] sm:$0xff]
    %v449 = vld [vmem:[#allocation8 + $0x528] sm:$0xff]
    %v450 = vld [vmem:[#allocation8 + $0x530] sm:$0xff]
    %v451 = vld [vmem:[#allocation8 + $0x538] sm:$0xff]
    %v452 = vld [vmem:[#allocation8 + $0x540] sm:$0xff]
    %v453 = vld [vmem:[#allocation8 + $0x548] sm:$0xff]
    %v454 = vld [vmem:[#allocation8 + $0x550] sm:$0xff]
    %v455 = vld [vmem:[#allocation8 + $0x558] sm:$0xff]
    %v456 = vld [vmem:[#allocation8 + $0x560] sm:$0xff]
    %v457 = vld [vmem:[#allocation8 + $0x568] sm:$0xff]
    %v458 = vld [vmem:[#allocation8 + $0x570] sm:$0xff]
    %v459 = vld [vmem:[#allocation8 + $0x578] sm:$0xff]
    %v460 = vld [vmem:[#allocation8 + $0x580] sm:$0xff]
    %v461 = vld [vmem:[#allocation8 + $0x588] sm:$0xff]
    %v462 = vld [vmem:[#allocation8 + $0x590] sm:$0xff]
    %v463 = vld [vmem:[#allocation8 + $0x598] sm:$0xff]
    %v464 = vld [vmem:[#allocation8 + $0x5a0] sm:$0xff]
    %v465 = vld [vmem:[#allocation8 + $0x5a8] sm:$0xff]
    %v466 = vld [vmem:[#allocation8 + $0x5b0] sm:$0xff]
    %v467 = vld [vmem:[#allocation8 + $0x5b8] sm:$0xff]
    %v468 = vld [vmem:[#allocation8 + $0x5c0] sm:$0xff]
    %v469 = vld [vmem:[#allocation8 + $0x5c8] sm:$0xff]
    %v470 = vld [vmem:[#allocation8 + $0x5d0] sm:$0xff]
    %v471 = vld [vmem:[#allocation8 + $0x5d8] sm:$0xff]
    %v472 = vld [vmem:[#allocation8 + $0x5e0] sm:$0xff]
    %v473 = vld [vmem:[#allocation8 + $0x5e8] sm:$0xff]
    %v474 = vld [vmem:[#allocation8 + $0x5f0] sm:$0xff]
    %v475 = vld [vmem:[#allocation8 + $0x5f8] sm:$0xff]
    %v476 = vld [vmem:[#allocation5] sm:$0xff]
    %v477 = vld [vmem:[#allocation10] sm:$0xff]
    %v478 = vld [vmem:[#allocation10 + $0x8] sm:$0xff]
    %v479 = vld [vmem:[#allocation10 + $0x10] sm:$0xff]
    %vm480 = vcmask 64512
    %v482 = vsel %vm480, %v476, 0
    %484 = vmatprep.subr.mxu0 0.0
    %485 = vmatpush1.msra.mxu0 0.0
    %486 = vmatprep.subr.mxu0 0.0
    %487 = vmatpush1.msra.mxu0 0.0
    %488 = vmatprep.subr.mxu0 0.0
    %489 = vmatpush1.msra.mxu0 0.0
    %490 = vmatprep.subr.mxu0 0.0
    %491 = vmatpush1.msra.mxu0 0.0
    %492 = vmatprep.subr.mxu0 0.0
    %493 = vmatpush1.msra.mxu0 0.0
    %494 = vmatprep.subr.mxu0 0.0
    %495 = vmatpush1.msra.mxu0 0.0
    %496 = vmatprep.subr.mxu0 0.0
    %497 = vmatpush1.msra.mxu0 0.0
    %498 = vmatprep.subr.mxu0 0.0
    %499 = vmatpush1.msra.mxu0 0.0
    %500 = vmatprep.subr.mxu0 0.0
    %501 = vmatpush1.msra.mxu0 0.0
    %502 = vmatprep.subr.mxu0 0.0
    %503 = vmatpush1.msra.mxu0 0.0
    %504 = vmatprep.subr.mxu0 0.0
    %505 = vmatpush1.msra.mxu0 0.0
    %506 = vmatprep.subr.mxu0 0.0
    %507 = vmatpush1.msra.mxu0 0.0
    %508 = vmatprep.subr.mxu0 0.0
    %509 = vmatpush1.msra.mxu0 0.0
    %510 = vmatprep.subr.mxu0 0.0
    %511 = vmatpush1.msra.mxu0 0.0
    %512 = vmatprep.subr.mxu0 0.0
    %513 = vmatpush1.msra.mxu0 0.0
    %514 = vmatprep.subr.mxu0 %v478
    %515 = vmatpush1.msra.mxu0 %v477
    %516 = vmatprep.subr.mxu0 0.0
    %517 = vmatpush2.msra.mxu0 0.0
    %518 = vmatprep.subr.mxu0 0.0
    %519 = vmatpush2.msra.mxu0 0.0
    %520 = vmatprep.subr.mxu0 0.0
    %521 = vmatpush2.msra.mxu0 0.0
    %522 = vmatprep.subr.mxu0 0.0
    %523 = vmatpush2.msra.mxu0 0.0
    %524 = vmatprep.subr.mxu0 0.0
    %525 = vmatpush2.msra.mxu0 0.0
    %526 = vmatprep.subr.mxu0 0.0
    %527 = vmatpush2.msra.mxu0 0.0
    %528 = vmatprep.subr.mxu0 0.0
    %529 = vmatpush2.msra.mxu0 0.0
    %530 = vmatprep.subr.mxu0 0.0
    %531 = vmatpush2.msra.mxu0 0.0
    %532 = vmatprep.subr.mxu0 0.0
    %533 = vmatpush2.msra.mxu0 0.0
    %534 = vmatprep.subr.mxu0 0.0
    %535 = vmatpush2.msra.mxu0 0.0
    %536 = vmatprep.subr.mxu0 0.0
    %537 = vmatpush2.msra.mxu0 0.0
    %538 = vmatprep.subr.mxu0 0.0
    %539 = vmatpush2.msra.mxu0 0.0
    %540 = vmatprep.subr.mxu0 0.0
    %541 = vmatpush2.msra.mxu0 0.0
    %542 = vmatprep.subr.mxu0 0.0
    %543 = vmatpush2.msra.mxu0 0.0
    %544 = vmatprep.subr.mxu0 0.0
    %545 = vmatpush2.msra.mxu0 0.0
    %546 = vmatprep.subr.mxu0 0.0
    %547 = vmatpush2.msra.mxu0 0.0
    %548 = vmatprep.mubr.f32.mxu0 0.0
    %549 = vmatmul.mubr.f32.gmra.mxu0 %v482
    %v550 = vpop.f32.mrf.mxu0
    %v551 = vadd.f32 0.0, %v550
    %v552 = vpop.f32.mrf.mxu0
    %v553 = vadd.f32 0.0, %v552
    %554 = vdwg.mxu0
    %555 = vmatprep.subr.mxu0 0.0
    %556 = vmatpush1.msra.mxu0 0.0
    %557 = vmatprep.subr.mxu0 0.0
    %558 = vmatpush1.msra.mxu0 0.0
    %559 = vmatprep.subr.mxu0 0.0
    %560 = vmatpush1.msra.mxu0 0.0
    %561 = vmatprep.subr.mxu0 0.0
    %562 = vmatpush1.msra.mxu0 0.0
    %563 = vmatprep.subr.mxu0 0.0
    %564 = vmatpush1.msra.mxu0 0.0
    %565 = vmatprep.subr.mxu0 0.0
    %566 = vmatpush1.msra.mxu0 0.0
    %567 = vmatprep.subr.mxu0 0.0
    %568 = vmatpush1.msra.mxu0 0.0
    %569 = vmatprep.subr.mxu0 0.0
    %570 = vmatpush1.msra.mxu0 0.0
    %571 = vmatprep.subr.mxu0 0.0
    %572 = vmatpush1.msra.mxu0 0.0
    %573 = vmatprep.subr.mxu0 0.0
    %574 = vmatpush1.msra.mxu0 0.0
    %575 = vmatprep.subr.mxu0 0.0
    %576 = vmatpush1.msra.mxu0 0.0
    %577 = vmatprep.subr.mxu0 0.0
    %578 = vmatpush1.msra.mxu0 0.0
    %579 = vmatprep.subr.mxu0 0.0
    %580 = vmatpush1.msra.mxu0 0.0
    %581 = vmatprep.subr.mxu0 0.0
    %582 = vmatpush1.msra.mxu0 0.0
    %583 = vmatprep.subr.mxu0 0.0
    %584 = vmatpush1.msra.mxu0 0.0
    %585 = vmatprep.subr.mxu0 0.0
    %586 = vmatpush1.msra.mxu0 %v479
    %587 = vmatprep.subr.mxu0 0.0
    %588 = vmatpush2.msra.mxu0 0.0
    %589 = vmatprep.subr.mxu0 0.0
    %590 = vmatpush2.msra.mxu0 0.0
    %591 = vmatprep.subr.mxu0 0.0
    %592 = vmatpush2.msra.mxu0 0.0
    %593 = vmatprep.subr.mxu0 0.0
    %594 = vmatpush2.msra.mxu0 0.0
    %595 = vmatprep.subr.mxu0 0.0
    %596 = vmatpush2.msra.mxu0 0.0
    %597 = vmatprep.subr.mxu0 0.0
    %598 = vmatpush2.msra.mxu0 0.0
    %599 = vmatprep.subr.mxu0 0.0
    %600 = vmatpush2.msra.mxu0 0.0
    %601 = vmatprep.subr.mxu0 0.0
    %602 = vmatpush2.msra.mxu0 0.0
    %603 = vmatprep.subr.mxu0 0.0
    %604 = vmatpush2.msra.mxu0 0.0
    %605 = vmatprep.subr.mxu0 0.0
    %606 = vmatpush2.msra.mxu0 0.0
    %607 = vmatprep.subr.mxu0 0.0
    %608 = vmatpush2.msra.mxu0 0.0
    %609 = vmatprep.subr.mxu0 0.0
    %610 = vmatpush2.msra.mxu0 0.0
    %611 = vmatprep.subr.mxu0 0.0
    %612 = vmatpush2.msra.mxu0 0.0
    %613 = vmatprep.subr.mxu0 0.0
    %614 = vmatpush2.msra.mxu0 0.0
    %615 = vmatprep.subr.mxu0 0.0
    %616 = vmatpush2.msra.mxu0 0.0
    %617 = vmatprep.subr.mxu0 0.0
    %618 = vmatpush2.msra.mxu0 0.0
    %619 = vmatprep.mubr.f32.mxu0 0.0
    %620 = vmatmul.mubr.f32.gmra.mxu0 %v482
    %v621 = vpop.f32.mrf.mxu0
    %v622 = vadd.f32 0.0, %v621
    %v623 = vpop.f32.mrf.mxu0
    %624 = vdwg.mxu0
    %625 = vmatprep.subr.mxu0 %v330
    %626 = vmatpush1.msra.mxu0 %v329
    %627 = vmatprep.subr.mxu0 %v327
    %628 = vmatpush1.msra.mxu0 %v326
    %629 = vmatprep.subr.mxu0 %v324
    %630 = vmatpush1.msra.mxu0 %v323
    %631 = vmatprep.subr.mxu0 %v321
    %632 = vmatpush1.msra.mxu0 %v320
    %633 = vmatprep.subr.mxu0 %v318
    %634 = vmatpush1.msra.mxu0 %v317
    %635 = vmatprep.subr.mxu0 %v315
    %636 = vmatpush1.msra.mxu0 %v314
    %637 = vmatprep.subr.mxu0 %v312
    %638 = vmatpush1.msra.mxu0 %v311
    %639 = vmatprep.subr.mxu0 %v309
    %640 = vmatpush1.msra.mxu0 %v308
    %641 = vmatprep.subr.mxu0 %v306
    %642 = vmatpush1.msra.mxu0 %v305
    %643 = vmatprep.subr.mxu0 %v303
    %644 = vmatpush1.msra.mxu0 %v302
    %645 = vmatprep.subr.mxu0 %v300
    %646 = vmatpush1.msra.mxu0 %v299
    %647 = vmatprep.subr.mxu0 %v297
    %648 = vmatpush1.msra.mxu0 %v296
    %649 = vmatprep.subr.mxu0 %v294
    %650 = vmatpush1.msra.mxu0 %v293
    %651 = vmatprep.subr.mxu0 %v291
    %652 = vmatpush1.msra.mxu0 %v290
    %653 = vmatprep.subr.mxu0 %v288
    %654 = vmatpush1.msra.mxu0 %v287
    %655 = vmatprep.subr.mxu0 %v285
    %656 = vmatpush1.msra.mxu0 %v284
    %657 = vmatprep.subr.mxu0 %v378
    %658 = vmatpush2.msra.mxu0 %v377
    %659 = vmatprep.subr.mxu0 %v375
    %660 = vmatpush2.msra.mxu0 %v374
    %661 = vmatprep.subr.mxu0 %v372
    %662 = vmatpush2.msra.mxu0 %v371
    %663 = vmatprep.subr.mxu0 %v369
    %664 = vmatpush2.msra.mxu0 %v368
    %665 = vmatprep.subr.mxu0 %v366
    %666 = vmatpush2.msra.mxu0 %v365
    %667 = vmatprep.subr.mxu0 %v363
    %668 = vmatpush2.msra.mxu0 %v362
    %669 = vmatprep.subr.mxu0 %v360
    %670 = vmatpush2.msra.mxu0 %v359
    %671 = vmatprep.subr.mxu0 %v357
    %672 = vmatpush2.msra.mxu0 %v356
    %673 = vmatprep.subr.mxu0 %v354
    %674 = vmatpush2.msra.mxu0 %v353
    %675 = vmatprep.subr.mxu0 %v351
    %676 = vmatpush2.msra.mxu0 %v350
    %677 = vmatprep.subr.mxu0 %v348
    %678 = vmatpush2.msra.mxu0 %v347
    %679 = vmatprep.subr.mxu0 %v345
    %680 = vmatpush2.msra.mxu0 %v344
    %681 = vmatprep.subr.mxu0 %v342
    %682 = vmatpush2.msra.mxu0 %v341
    %683 = vmatprep.subr.mxu0 %v339
    %684 = vmatpush2.msra.mxu0 %v338
    %685 = vmatprep.subr.mxu0 %v336
    %686 = vmatpush2.msra.mxu0 %v335
    %687 = vmatprep.subr.mxu0 %v333
    %688 = vmatpush2.msra.mxu0 %v332
    %689 = vmatprep.mubr.f32.mxu0 %v281
    %690 = vmatmul.mubr.f32.gmra.mxu0 %v280
    %v691 = vpop.f32.mrf.mxu0
    %v692 = vadd.f32 %v551, %v691
    %v693 = vpop.f32.mrf.mxu0
    %v694 = vadd.f32 %v553, %v693
    %695 = vdwg.mxu0
    %696 = vmatprep.subr.mxu0 %v426
    %697 = vmatpush1.msra.mxu0 %v425
    %698 = vmatprep.subr.mxu0 %v423
    %699 = vmatpush1.msra.mxu0 %v422
    %700 = vmatprep.subr.mxu0 %v420
    %701 = vmatpush1.msra.mxu0 %v419
    %702 = vmatprep.subr.mxu0 %v417
    %703 = vmatpush1.msra.mxu0 %v416
    %704 = vmatprep.subr.mxu0 %v414
    %705 = vmatpush1.msra.mxu0 %v413
    %706 = vmatprep.subr.mxu0 %v411
    %707 = vmatpush1.msra.mxu0 %v410
    %708 = vmatprep.subr.mxu0 %v408
    %709 = vmatpush1.msra.mxu0 %v407
    %710 = vmatprep.subr.mxu0 %v405
    %711 = vmatpush1.msra.mxu0 %v404
    %712 = vmatprep.subr.mxu0 %v402
    %713 = vmatpush1.msra.mxu0 %v401
    %714 = vmatprep.subr.mxu0 %v399
    %715 = vmatpush1.msra.mxu0 %v398
    %716 = vmatprep.subr.mxu0 %v396
    %717 = vmatpush1.msra.mxu0 %v395
    %718 = vmatprep.subr.mxu0 %v393
    %719 = vmatpush1.msra.mxu0 %v392
    %720 = vmatprep.subr.mxu0 %v390
    %721 = vmatpush1.msra.mxu0 %v389
    %722 = vmatprep.subr.mxu0 %v387
    %723 = vmatpush1.msra.mxu0 %v386
    %724 = vmatprep.subr.mxu0 %v384
    %725 = vmatpush1.msra.mxu0 %v383
    %726 = vmatprep.subr.mxu0 %v381
    %727 = vmatpush1.msra.mxu0 %v380
    %728 = vmatprep.subr.mxu0 %v474
    %729 = vmatpush2.msra.mxu0 %v473
    %730 = vmatprep.subr.mxu0 %v471
    %731 = vmatpush2.msra.mxu0 %v470
    %732 = vmatprep.subr.mxu0 %v468
    %733 = vmatpush2.msra.mxu0 %v467
    %734 = vmatprep.subr.mxu0 %v465
    %735 = vmatpush2.msra.mxu0 %v464
    %736 = vmatprep.subr.mxu0 %v462
    %737 = vmatpush2.msra.mxu0 %v461
    %738 = vmatprep.subr.mxu0 %v459
    %739 = vmatpush2.msra.mxu0 %v458
    %740 = vmatprep.subr.mxu0 %v456
    %741 = vmatpush2.msra.mxu0 %v455
    %742 = vmatprep.subr.mxu0 %v453
    %743 = vmatpush2.msra.mxu0 %v452
    %744 = vmatprep.subr.mxu0 %v450
    %745 = vmatpush2.msra.mxu0 %v449
    %746 = vmatprep.subr.mxu0 %v447
    %747 = vmatpush2.msra.mxu0 %v446
    %748 = vmatprep.subr.mxu0 %v444
    %749 = vmatpush2.msra.mxu0 %v443
    %750 = vmatprep.subr.mxu0 %v441
    %751 = vmatpush2.msra.mxu0 %v440
    %752 = vmatprep.subr.mxu0 %v438
    %753 = vmatpush2.msra.mxu0 %v437
    %754 = vmatprep.subr.mxu0 %v435
    %755 = vmatpush2.msra.mxu0 %v434
    %756 = vmatprep.subr.mxu0 %v432
    %757 = vmatpush2.msra.mxu0 %v431
    %758 = vmatprep.subr.mxu0 %v429
    %759 = vmatpush2.msra.mxu0 %v428
    %760 = vmatprep.mubr.f32.mxu0 %v283
    %761 = vmatmul.mubr.f32.gmra.mxu0 %v282
    %v762 = vpop.f32.mrf.mxu0
    %v763 = vadd.f32 %v692, %v762
    %v764 = vpop.f32.mrf.mxu0
    %v765 = vadd.f32 %v694, %v764
    %766 = vdwg.mxu0
    %767 = vmatprep.subr.mxu0 0.0
    %768 = vmatpush1.msra.mxu0 %v331
    %769 = vmatprep.subr.mxu0 0.0
    %770 = vmatpush1.msra.mxu0 %v328
    %771 = vmatprep.subr.mxu0 0.0
    %772 = vmatpush1.msra.mxu0 %v325
    %773 = vmatprep.subr.mxu0 0.0
    %774 = vmatpush1.msra.mxu0 %v322
    %775 = vmatprep.subr.mxu0 0.0
    %776 = vmatpush1.msra.mxu0 %v319
    %777 = vmatprep.subr.mxu0 0.0
    %778 = vmatpush1.msra.mxu0 %v316
    %779 = vmatprep.subr.mxu0 0.0
    %780 = vmatpush1.msra.mxu0 %v313
    %781 = vmatprep.subr.mxu0 0.0
    %782 = vmatpush1.msra.mxu0 %v310
    %783 = vmatprep.subr.mxu0 0.0
    %784 = vmatpush1.msra.mxu0 %v307
    %785 = vmatprep.subr.mxu0 0.0
    %786 = vmatpush1.msra.mxu0 %v304
    %787 = vmatprep.subr.mxu0 0.0
    %788 = vmatpush1.msra.mxu0 %v301
    %789 = vmatprep.subr.mxu0 0.0
    %790 = vmatpush1.msra.mxu0 %v298
    %791 = vmatprep.subr.mxu0 0.0
    %792 = vmatpush1.msra.mxu0 %v295
    %793 = vmatprep.subr.mxu0 0.0
    %794 = vmatpush1.msra.mxu0 %v292
    %795 = vmatprep.subr.mxu0 0.0
    %796 = vmatpush1.msra.mxu0 %v289
    %797 = vmatprep.subr.mxu0 0.0
    %798 = vmatpush1.msra.mxu0 %v286
    %799 = vmatprep.subr.mxu0 0.0
    %800 = vmatpush2.msra.mxu0 %v379
    %801 = vmatprep.subr.mxu0 0.0
    %802 = vmatpush2.msra.mxu0 %v376
    %803 = vmatprep.subr.mxu0 0.0
    %804 = vmatpush2.msra.mxu0 %v373
    %805 = vmatprep.subr.mxu0 0.0
    %806 = vmatpush2.msra.mxu0 %v370
    %807 = vmatprep.subr.mxu0 0.0
    %808 = vmatpush2.msra.mxu0 %v367
    %809 = vmatprep.subr.mxu0 0.0
    %810 = vmatpush2.msra.mxu0 %v364
    %811 = vmatprep.subr.mxu0 0.0
    %812 = vmatpush2.msra.mxu0 %v361
    %813 = vmatprep.subr.mxu0 0.0
    %814 = vmatpush2.msra.mxu0 %v358
    %815 = vmatprep.subr.mxu0 0.0
    %816 = vmatpush2.msra.mxu0 %v355
    %817 = vmatprep.subr.mxu0 0.0
    %818 = vmatpush2.msra.mxu0 %v352
    %819 = vmatprep.subr.mxu0 0.0
    %820 = vmatpush2.msra.mxu0 %v349
    %821 = vmatprep.subr.mxu0 0.0
    %822 = vmatpush2.msra.mxu0 %v346
    %823 = vmatprep.subr.mxu0 0.0
    %824 = vmatpush2.msra.mxu0 %v343
    %825 = vmatprep.subr.mxu0 0.0
    %826 = vmatpush2.msra.mxu0 %v340
    %827 = vmatprep.subr.mxu0 0.0
    %828 = vmatpush2.msra.mxu0 %v337
    %829 = vmatprep.subr.mxu0 0.0
    %830 = vmatpush2.msra.mxu0 %v334
    %831 = vmatprep.mubr.f32.mxu0 %v281
    %832 = vmatmul.mubr.f32.gmra.mxu0 %v280
    %v833 = vpop.f32.mrf.mxu0
    %v834 = vadd.f32 %v622, %v833
    %v835 = vpop.f32.mrf.mxu0
    %836 = vdwg.mxu0
    %837 = vmatprep.subr.mxu0 0.0
    %838 = vmatpush1.msra.mxu0 %v427
    %839 = vmatprep.subr.mxu0 0.0
    %840 = vmatpush1.msra.mxu0 %v424
    %841 = vmatprep.subr.mxu0 0.0
    %842 = vmatpush1.msra.mxu0 %v421
    %843 = vmatprep.subr.mxu0 0.0
    %844 = vmatpush1.msra.mxu0 %v418
    %845 = vmatprep.subr.mxu0 0.0
    %846 = vmatpush1.msra.mxu0 %v415
    %847 = vmatprep.subr.mxu0 0.0
    %848 = vmatpush1.msra.mxu0 %v412
    %849 = vmatprep.subr.mxu0 0.0
    %850 = vmatpush1.msra.mxu0 %v409
    %851 = vmatprep.subr.mxu0 0.0
    %852 = vmatpush1.msra.mxu0 %v406
    %853 = vmatprep.subr.mxu0 0.0
    %854 = vmatpush1.msra.mxu0 %v403
    %855 = vmatprep.subr.mxu0 0.0
    %856 = vmatpush1.msra.mxu0 %v400
    %857 = vmatprep.subr.mxu0 0.0
    %858 = vmatpush1.msra.mxu0 %v397
    %859 = vmatprep.subr.mxu0 0.0
    %860 = vmatpush1.msra.mxu0 %v394
    %861 = vmatprep.subr.mxu0 0.0
    %862 = vmatpush1.msra.mxu0 %v391
    %863 = vmatprep.subr.mxu0 0.0
    %864 = vmatpush1.msra.mxu0 %v388
    %865 = vmatprep.subr.mxu0 0.0
    %866 = vmatpush1.msra.mxu0 %v385
    %867 = vmatprep.subr.mxu0 0.0
    %868 = vmatpush1.msra.mxu0 %v382
    %869 = vmatprep.subr.mxu0 0.0
    %870 = vmatpush2.msra.mxu0 %v475
    %871 = vmatprep.subr.mxu0 0.0
    %872 = vmatpush2.msra.mxu0 %v472
    %873 = vmatprep.subr.mxu0 0.0
    %874 = vmatpush2.msra.mxu0 %v469
    %875 = vmatprep.subr.mxu0 0.0
    %876 = vmatpush2.msra.mxu0 %v466
    %877 = vmatprep.subr.mxu0 0.0
    %878 = vmatpush2.msra.mxu0 %v463
    %879 = vmatprep.subr.mxu0 0.0
    %880 = vmatpush2.msra.mxu0 %v460
    %881 = vmatprep.subr.mxu0 0.0
    %882 = vmatpush2.msra.mxu0 %v457
    %883 = vmatprep.subr.mxu0 0.0
    %884 = vmatpush2.msra.mxu0 %v454
    %885 = vmatprep.subr.mxu0 0.0
    %886 = vmatpush2.msra.mxu0 %v451
    %887 = vmatprep.subr.mxu0 0.0
    %888 = vmatpush2.msra.mxu0 %v448
    %889 = vmatprep.subr.mxu0 0.0
    %890 = vmatpush2.msra.mxu0 %v445
    %891 = vmatprep.subr.mxu0 0.0
    %892 = vmatpush2.msra.mxu0 %v442
    %893 = vmatprep.subr.mxu0 0.0
    %894 = vmatpush2.msra.mxu0 %v439
    %895 = vmatprep.subr.mxu0 0.0
    %896 = vmatpush2.msra.mxu0 %v436
    %897 = vmatprep.subr.mxu0 0.0
    %898 = vmatpush2.msra.mxu0 %v433
    %899 = vmatprep.subr.mxu0 0.0
    %900 = vmatpush2.msra.mxu0 %v430
    %901 = vmatprep.mubr.f32.mxu0 %v283
    %902 = vmatmul.mubr.f32.gmra.mxu0 %v282
    %v903 = vpop.f32.mrf.mxu0
    %v904 = vadd.f32 %v834, %v903
    %v905 = vpop.f32.mrf.mxu0
    %906 = vdwg.mxu0
    %v907 = vld [vmem:[%s6] sm:$0x7]
    %v909 = vlaneseq
    %v910 = vshrl.u32 %v909, 7
    %v911 = vsub.s32 0, %v910
    %v912 = vrot.slane %v907, %v911
    %v913 = vlaneseq
    %v914 = vshrl.u32 %v913, 7
    %v915 = vsub.s32 1, %v914
    %v916 = vrot.slane %v907, %v915
    %v917 = vlaneseq
    %v918 = vshrl.u32 %v917, 7
    %v919 = vsub.s32 2, %v918
    %v920 = vrot.slane %v907, %v919
    %v924 = vadd.f32 %v763, %v912
    %v925 = vadd.f32 %v765, %v916
    %v926 = vadd.f32 %v904, %v920
    %v927 = vmax.f32 %v924, 0.0
    %v928 = vmax.f32 %v925, 0.0
    %v929 = vmax.f32 %v926, 0.0
    %v930 = vld [vmem:[%s7] sm:$0x7]
    %v932 = vlaneseq
    %v933 = vshrl.u32 %v932, 7
    %v934 = vsub.s32 0, %v933
    %v935 = vrot.slane %v930, %v934
    %v936 = vlaneseq
    %v937 = vshrl.u32 %v936, 7
    %v938 = vsub.s32 1, %v937
    %v939 = vrot.slane %v930, %v938
    %v940 = vlaneseq
    %v941 = vshrl.u32 %v940, 7
    %v942 = vsub.s32 2, %v941
    %v943 = vrot.slane %v930, %v942
    %v947 = vmul.f32 %v927, %v935
    %v948 = vmul.f32 %v928, %v939
    %v949 = vmul.f32 %v929, %v943
    %v950 = vadd.f32 %v947, %v948
    %v951 = vadd.f32 %v950, %v949
    %952 = vadd.xlane.f32.xlu0 %v951
    %v953 = vpop.xlane.xlu0 %952
    %s954 = sld [smem:[#allocation2]]
    %v955 = vstv %s954
    %v956 = vadd.f32 %v953, %v955
    %vm957 = vcmask 7168
    %958 = vst.msk [vmem:[%s9] sm:$0xff] %vm957, %v956
    // Predicated region
    $region58: #{_critic_forward_impl.1} parent=1 // pred_check
      _
    $region59: #{_critic_forward_impl.1} parent=1 // pred_check_branch
      %960 = sbr.rel (0) target = $region61
    $region60: #{_critic_forward_impl.1} parent=1 // pred_region
      _
    $region61: #{_critic_forward_impl.1} parent=1 // pred_fallthru
      _
    // Predicated region
    $region62: #{_critic_forward_impl.1} parent=1 // pred_check
      _
    $region63: #{_critic_forward_impl.1} parent=1 // pred_check_branch
      %962 = sbr.rel (0) target = $region65
    $region64: #{_critic_forward_impl.1} parent=1 // pred_region
      _
    $region65: #{_critic_forward_impl.1} parent=1 // pred_fallthru
      _
    %963 = vsyncpa [#allocation4], 1
    %964 = vsyncpa [#allocation6], 1
    %965 = vsyncpa [#allocation9], 1

</llo_original>
